<compile_context>
chip_gen: v7x
topology: tpu7x:2x2x1
jax: 0.10.0
libtpu: 0.0.40
codegen_flags: <defaults>
</compile_context>

<pallas_src>
import functools

import jax
import jax.numpy as jnp
from jax import lax
from jax.experimental import pallas as pl
from jax.experimental.pallas import tpu as pltpu


# ---------------------------------------------------------------------------
# VMEM budgeting (generation aware).
# ---------------------------------------------------------------------------
def _vmem_budgets():
    """Returns (resident pipeline-buffer budget, hard cap for vmem_limit_bytes)."""
    cap = None
    try:
        cap = getattr(pltpu.get_tpu_info(), "vmem_capacity_bytes", None)
    except Exception:
        cap = None
    if cap is None:
        cap = 64 << 20                       # assume the smallest (v7x-sized) part
    if cap >= (96 << 20):                    # v5e / v6e: 128 MiB physical per core
        return 80 << 20, 104 << 20
    return 40 << 20, 56 << 20                # v7x: 64 MiB physical per TensorCore


def _split_for_two_cores(B, F, T, tile_f, tile_t):
    """If one sample fits a single block, split bins so both v7x TCs get work."""
    if B > 1 or pl.cdiv(F, tile_f) * pl.cdiv(T, tile_t) > 1:
        return tile_f, tile_t
    if F >= 16:
        half_f = ((F + 1) // 2 + 7) // 8 * 8       # ceil(F/2) rounded up to mult of 8
        if half_f < F:
            return half_f, tile_t
    if T >= 256:
        return tile_f, 128
    return tile_f, tile_t


# ---------------------------------------------------------------------------
# Interleaved-input kernel: (B, C, F, 2T) blocks, de-interleave on the MXU.
# ---------------------------------------------------------------------------
def _interleaved_kernel(x_ref, out_ref, *, power, mono, t2_total, tile_t2, mask_tail):
    """One (1, C, tile_f, 2*tile_t) interleaved block -> (1, out_c, tile_f, tile_t)."""
    x = x_ref[...].astype(jnp.float32)       # lanes: re0, im0, re1, im1, ...
    x2 = x * x
    if mask_tail:
        # Zero padded tail lanes: stale VMEM can hold Inf/NaN, and 0 * Inf = NaN would
        # otherwise contaminate valid columns of the selection matmul below.
        valid = t2_total - pl.program_id(2) * tile_t2
        lane = lax.broadcasted_iota(jnp.int32, (1, 1, 1, tile_t2), dimension=3)
        x2 = jnp.where(lane < valid, x2, 0.0)

    tt2 = x2.shape[-1]
    tt = tt2 // 2
    # 0/1 selection matrix: column t sums lanes 2t (re^2) and 2t+1 (im^2) into a
    # lane-dense |X|^2.  Exact under Precision.HIGHEST since the matrix is 0/1.
    row = lax.broadcasted_iota(jnp.int32, (tt2, tt), dimension=0)
    col = lax.broadcasted_iota(jnp.int32, (tt2, tt), dimension=1)
    sel = (row // 2 == col).astype(jnp.float32)

    nb_ch = x2.shape[1]
    acc = None
    for ch in range(nb_ch):                  # static unroll, C is small
        sq = jnp.dot(x2[0, ch], sel,
                     preferred_element_type=jnp.float32,
                     precision=lax.Precision.HIGHEST)
        if power == 2:
            mag = sq
        elif power == 1:
            mag = jnp.sqrt(sq)
        else:
            # NOTE: well-defined at sq == 0; do not rewrite as exp(log(sq)*p/2).
            mag = jnp.power(sq, 0.5 * float(power))
        if mono:
            acc = mag if acc is None else acc + mag
        else:
            out_ref[0, ch, :, :] = mag.astype(out_ref.dtype)
    if mono:
        out_ref[0, 0, :, :] = (acc * (1.0 / nb_ch)).astype(out_ref.dtype)


def _choose_tiles_interleaved(C, F, T, out_c, itemsize, budget):
    # tile_t capped at 256 so the MXU selection matmul stays under the HBM roofline on
    # all generations; block size comes from the bins (sublane) axis instead.
    t_cands = [T] if T <= 512 else [256, 128]
    f_cands = [F] if F <= 2048 else [2048, 1024, 512, 256, 128, 64, 32, 16, 8]

    def resident(tf, tt):
        in_blk = C * tf * (2 * tt) * itemsize
        out_blk = out_c * tf * tt * itemsize
        return 2 * in_blk + 2 * out_blk          # double-buffered input + output

    for tt in t_cands:
        for tf in f_cands:
            if resident(tf, tt) <= budget:
                return tf, tt
    return f_cands[-1], t_cands[-1]


def spectrogram_interleaved(stft_f, power=1, mono=True):
    """(B, C, F, T, 2) complex-interleaved STFT -> (B, 1 if mono else C, F, T)."""
    assert stft_f.ndim == 5 and stft_f.shape[-1] == 2
    B, C, F, T, _ = stft_f.shape
    out_c = 1 if mono else C
    itemsize = jnp.dtype(stft_f.dtype).itemsize

    if T < 64:
        # Tiny frame counts: overhead-bound anyway; use the planar streaming path
        # (keeps the selection matmul well-shaped for the MXU on the main path).
        return spectrogram_planar(stft_f[..., 0], stft_f[..., 1], power=power, mono=mono)

    budget, hard_cap = _vmem_budgets()
    tile_f, tile_t = _choose_tiles_interleaved(C, F, T, out_c, itemsize, budget)
    tile_f, tile_t = _split_for_two_cores(B, F, T, tile_f, tile_t)
    resident = (2 * C * tile_f * 2 * tile_t + 2 * out_c * tile_f * tile_t) * itemsize

    grid = (B, pl.cdiv(F, tile_f), pl.cdiv(T, tile_t))
    mask_tail = (T % tile_t) != 0

    x = stft_f.reshape(B, C, F, 2 * T)           # free view: trailing dims merge
    in_spec = pl.BlockSpec((1, C, tile_f, 2 * tile_t), lambda b, fi, ti: (b, 0, fi, ti))
    out_spec = pl.BlockSpec((1, out_c, tile_f, tile_t), lambda b, fi, ti: (b, 0, fi, ti))

    vmem_limit = int(min(max(resident + resident // 4, 32 << 20), hard_cap))
    in_bytes = B * C * F * T * 2 * itemsize
    out_bytes = B * out_c * F * T * itemsize
    cost = pl.CostEstimate(
        flops=int(B * C * F * T * (3 + 4 * tile_t)),
        transcendentals=0 if power == 2 else int(B * C * F * T),
        bytes_accessed=int(in_bytes + out_bytes),
    )

    kernel = functools.partial(_interleaved_kernel, power=power, mono=mono,
                               t2_total=2 * T, tile_t2=2 * tile_t, mask_tail=mask_tail)
    return pl.pallas_call(
        kernel,
        out_shape=jax.ShapeDtypeStruct((B, out_c, F, T), stft_f.dtype),
        grid_spec=pl.GridSpec(grid=grid, in_specs=[in_spec], out_specs=out_spec),
        compiler_params=pltpu.CompilerParams(
            dimension_semantics=("parallel", "parallel", "parallel"),
            vmem_limit_bytes=vmem_limit,
        ),
        cost_estimate=cost,
    )(x)


# ---------------------------------------------------------------------------
# Planar-input kernel (pure streaming, no matmul) for upstreams with split re/im.
# ---------------------------------------------------------------------------
def _planar_kernel(re_ref, im_ref, out_ref, *, power, mono):
    re = re_ref[...].astype(jnp.float32)
    im = im_ref[...].astype(jnp.float32)
    sq = re * re + im * im
    if power == 2:
        mag = sq
    elif power == 1:
        mag = jnp.sqrt(sq)
    else:
        mag = jnp.power(sq, 0.5 * float(power))
    if mono:
        mag = jnp.mean(mag, axis=1, keepdims=True)
    out_ref[...] = mag.astype(out_ref.dtype)


def _choose_tiles_planar(C, F, T, out_c, itemsize, budget):
    t_cands = [T] if T <= 2048 else [2048, 1024, 512, 256, 128]
    f_cands = [F] if F <= 2048 else [2048, 1024, 512, 256, 128, 64, 32, 16, 8]

    def resident(tf, tt):
        in_blk = C * tf * tt * itemsize
        out_blk = out_c * tf * tt * itemsize
        return 2 * 2 * in_blk + 2 * out_blk      # 2 input streams x 2 buffers + output x 2

    for tt in t_cands:
        for tf in f_cands:
            if resident(tf, tt) <= budget:
                return tf, tt
    return f_cands[-1], t_cands[-1]


def spectrogram_planar(re, im, power=1, mono=True):
    """Magnitude/power spectrogram from planar real/imag planes, shape (B, C, F, T)."""
    assert re.shape == im.shape and re.dtype == im.dtype and re.ndim == 4
    B, C, F, T = re.shape
    out_c = 1 if mono else C
    itemsize = jnp.dtype(re.dtype).itemsize

    budget, hard_cap = _vmem_budgets()
    tile_f, tile_t = _choose_tiles_planar(C, F, T, out_c, itemsize, budget)
    tile_f, tile_t = _split_for_two_cores(B, F, T, tile_f, tile_t)
    resident = (2 * 2 * C + 2 * out_c) * tile_f * tile_t * itemsize

    grid = (B, pl.cdiv(F, tile_f), pl.cdiv(T, tile_t))
    index_map = lambda b, fi, ti: (b, 0, fi, ti)
    in_specs = [pl.BlockSpec((1, C, tile_f, tile_t), index_map) for _ in range(2)]
    out_spec = pl.BlockSpec((1, out_c, tile_f, tile_t), index_map)

    vmem_limit = int(min(max(resident + resident // 4, 32 << 20), hard_cap))
    cost = pl.CostEstimate(
        flops=int(3 * B * C * F * T),
        transcendentals=0 if power == 2 else int(B * C * F * T),
        bytes_accessed=int((2 * C + out_c) * B * F * T * itemsize),
    )

    kernel = functools.partial(_planar_kernel, power=power, mono=mono)
    return pl.pallas_call(
        kernel,
        out_shape=jax.ShapeDtypeStruct((B, out_c, F, T), re.dtype),
        grid_spec=pl.GridSpec(grid=grid, in_specs=in_specs, out_specs=out_spec),
        compiler_params=pltpu.CompilerParams(
            dimension_semantics=("parallel", "parallel", "parallel"),
            vmem_limit_bytes=vmem_limit,
        ),
        cost_estimate=cost,
    )(re, im)


# ---------------------------------------------------------------------------
# Drop-in module equivalent + pure-JAX reference.
# ---------------------------------------------------------------------------
@functools.partial(jax.jit, static_argnames=("power", "mono"))
def spectrogram(stft_f, power=1, mono=True):
    """Drop-in for the torch module: input (B, C, F, T, 2), complex-interleaved."""
    return spectrogram_interleaved(stft_f, power=power, mono=mono)


def spectrogram_ref(stft_f, power=1, mono=True):
    s = jnp.power(jnp.sum(stft_f.astype(jnp.float32) ** 2, axis=-1), power / 2.0)
    if mono:
        s = jnp.mean(s, axis=1, keepdims=True)
    return s.astype(stft_f.dtype)


if __name__ == "__main__":
    key = jax.random.PRNGKey(0)
    k1, k2, k3 = jax.random.split(key, 3)

    # Small smoke test (routes through the planar fallback), mono magnitude spectrogram.
    B, C, F, T = 2, 4, 16, 16
    x = jax.random.normal(k1, (B, C, F, T, 2), dtype=jnp.float32)
    out = jax.block_until_ready(spectrogram(x, power=1, mono=True))
    ref = spectrogram_ref(x, power=1, mono=True)
    assert out.shape == (B, 1, F, T), out.shape
    assert jnp.allclose(out, ref, atol=1e-5, rtol=1e-4), float(jnp.max(jnp.abs(out - ref)))

    # Power spectrogram, per-channel output.
    out2 = jax.block_until_ready(spectrogram(x, power=2, mono=False))
    ref2 = spectrogram_ref(x, power=2, mono=False)
    assert out2.shape == (B, C, F, T), out2.shape
    assert jnp.allclose(out2, ref2, atol=1e-5, rtol=1e-4), float(jnp.max(jnp.abs(out2 - ref2)))

    # Interleaved main path, tiled + padded frames tail: T=1300 -> tile_t=256, 6 T-tiles,
    # last block masked (exercises the Inf*0 guard and the selection matmul).
    B2, C2, F2, T2 = 1, 2, 40, 1300
    y = jax.random.normal(k2, (B2, C2, F2, T2, 2), dtype=jnp.float32)
    out3 = jax.block_until_ready(spectrogram(y, power=1, mono=True))
    ref3 = spectrogram_ref(y, power=1, mono=True)
    assert out3.shape == (B2, 1, F2, T2), out3.shape
    assert jnp.allclose(out3, ref3, atol=1e-5, rtol=1e-4), float(jnp.max(jnp.abs(out3 - ref3)))

    # Interleaved path, non-mono, single-sample (exercises the two-core bins split).
    B3, C3, F3, T3 = 1, 2, 24, 256
    z = jax.random.normal(k3, (B3, C3, F3, T3, 2), dtype=jnp.float32)
    out4 = jax.block_until_ready(spectrogram(z, power=2, mono=False))
    ref4 = spectrogram_ref(z, power=2, mono=False)
    assert out4.shape == (B3, C3, F3, T3), out4.shape
    assert jnp.allclose(out4, ref4, atol=1e-5, rtol=1e-4), float(jnp.max(jnp.abs(out4 - ref4)))

    # Planar fast path (for upstream STFTs that can emit split re/im directly).
    out5 = jax.block_until_ready(spectrogram_planar(x[..., 0], x[..., 1], power=1, mono=True))
    assert jnp.allclose(out5, ref, atol=1e-5, rtol=1e-4)

    print("KERNEL_OK")
</pallas_src>

<mosaic_0001>
module attributes {stable_mosaic.version = 11 : i64} {
  func.func @_planar_kernel(%arg0: i32, %arg1: i32, %arg2: i32, %arg3: memref<1x4x16x16xf32, #tpu.memory_space<vmem>>, %arg4: memref<1x4x16x16xf32, #tpu.memory_space<vmem>>, %arg5: memref<1x1x16x16xf32, #tpu.memory_space<vmem>>) attributes {dimension_semantics = [#tpu.dimension_semantics<parallel>, #tpu.dimension_semantics<parallel>, #tpu.dimension_semantics<parallel>], iteration_bounds = array<i64: 2, 1, 1>, scalar_prefetch = 0 : i64, scratch_operands = 0 : i64, tpu.core_type = #tpu.core_type<tc>, window_params = [{transform_indices = @transform_0, window_bounds = array<i64: 1, 4, 16, 16>}, {transform_indices = @transform_1, window_bounds = array<i64: 1, 4, 16, 16>}, {transform_indices = @transform_2, window_bounds = array<i64: 1, 1, 16, 16>}]} {
    %c0 = arith.constant 0 : index
    %c0_0 = arith.constant 0 : index
    %c0_1 = arith.constant 0 : index
    %c0_2 = arith.constant 0 : index
    %0 = vector.load %arg3[%c0, %c0_0, %c0_1, %c0_2] : memref<1x4x16x16xf32, #tpu.memory_space<vmem>>, vector<1x4x16x16xf32>
    %c0_3 = arith.constant 0 : index
    %c0_4 = arith.constant 0 : index
    %c0_5 = arith.constant 0 : index
    %c0_6 = arith.constant 0 : index
    %1 = vector.load %arg4[%c0_3, %c0_4, %c0_5, %c0_6] : memref<1x4x16x16xf32, #tpu.memory_space<vmem>>, vector<1x4x16x16xf32>
    %2 = arith.mulf %0, %0 : vector<1x4x16x16xf32>
    %3 = arith.mulf %1, %1 : vector<1x4x16x16xf32>
    %4 = arith.addf %2, %3 : vector<1x4x16x16xf32>
    %5 = math.sqrt %4 : vector<1x4x16x16xf32>
    %cst = arith.constant dense<0.000000e+00> : vector<1x16x16xf32>
    %6 = vector.multi_reduction <add>, %5, %cst [1] : vector<1x4x16x16xf32> to vector<1x16x16xf32>
    %7 = vector.shape_cast %6 : vector<1x16x16xf32> to vector<1x1x16x16xf32>
    %cst_7 = arith.constant 4.000000e+00 : f32
    %8 = vector.broadcast %cst_7 : f32 to vector<1x1x16x16xf32>
    %9 = arith.divf %7, %8 : vector<1x1x16x16xf32>
    %c0_8 = arith.constant 0 : index
    %c0_9 = arith.constant 0 : index
    %c0_10 = arith.constant 0 : index
    %c0_11 = arith.constant 0 : index
    %10 = vector.load %arg5[%c0_8, %c0_9, %c0_10, %c0_11] : memref<1x1x16x16xf32, #tpu.memory_space<vmem>>, vector<1x1x16x16xf32>
    tpu.vector_store %arg5[%c0_8, %c0_9, %c0_10, %c0_11], %9 {strides = array<i32>} : memref<1x1x16x16xf32, #tpu.memory_space<vmem>>, vector<1x1x16x16xf32>,
    return
  }
  func.func @transform_0(%arg0: i32, %arg1: i32, %arg2: i32) -> (i32, i32, i32, i32) {
    %c0_i32 = arith.constant 0 : i32
    %c0_i32_0 = arith.constant 0 : i32
    return %arg0, %c0_i32, %arg1, %arg2 : i32, i32, i32, i32
  }
  func.func @transform_1(%arg0: i32, %arg1: i32, %arg2: i32) -> (i32, i32, i32, i32) {
    %c0_i32 = arith.constant 0 : i32
    %c0_i32_0 = arith.constant 0 : i32
    return %arg0, %c0_i32, %arg1, %arg2 : i32, i32, i32, i32
  }
  func.func @transform_2(%arg0: i32, %arg1: i32, %arg2: i32) -> (i32, i32, i32, i32) {
    %c0_i32 = arith.constant 0 : i32
    %c0_i32_0 = arith.constant 0 : i32
    return %arg0, %c0_i32, %arg1, %arg2 : i32, i32, i32, i32
  }
}

</mosaic_0001>

<llo_original>
// kernel: spectrogram.1
$region0: #{spectrogram.1}
  #allocation0 [shape = 'u32[]', space=smem, size = 0x4, offset = 0x4, fixed_abs, tag = 'smem constant byte address 0x4 - core index']
  #allocation1 [shape = 'u32[144,128]{1,0:T(1,128)}', space=vmem, size = 0x12000, scoped, tag = 'internal scratch']
  %s0 = inlined_call_operand.vmem [shape: f32[2,4,16,16], index: 0, kind: input, shape index: {}]
  %s1 = inlined_call_operand.vmem [shape: f32[2,4,16,16], index: 1, kind: input, shape index: {}]
  %s2 = inlined_call_operand.hbm [shape: f32[2,1,16,16], index: 2, kind: output, shape index: {}]
  %s3 = sld [smem:[#allocation0]]
  $region41: #{spectrogram.1} parent=0
    _
  %s5 = ssub.s32 1, %s3
  %s6 = scalar_select 0, %s5, %s3
  $region1: #{spectrogram.1} parent=0
    #allocation2 [shape = 'u8[16384]{0}', space=vmem, size = 0x4000, scoped, tag = 'output window, operand 0']
    #allocation3 [shape = 's32[2]{0}', space=sflag, size = 0x8, scoped, tag = 'scoped memory for spectrogram.1']
    %7 = vsyncpa [#allocation3], 0
    %s8 = scalar_lea.sflag [#allocation3], 1
    %9 = vsyncpa %s8, 0
    loop: start=0, step=1, limit=4
    $region2: #{spectrogram.1} parent=1 // loop_pre_header
      _
    $region3: #{spectrogram.1} parent=1 // loop_header
      %s11 = sphi 0, %s15
      %p12 = scmp.ge.s32.totalorder %s11, 4
      %s18 = sphi 0, %s37
      %s19 = sphi 0, %s33
      %s20 = sphi 0, %s29
      %s21 = sphi 0, %s18
      %s22 = sphi 0, %s19
      %s23 = sphi 0, %s20
      %s24 = sphi 0, %s21
      %s25 = sphi 0, %s22
      %s26 = sphi 0, %s23
      %s44 = sphi 0, %s46
      %s47 = sphi 0, %s44
      %s48 = sphi 0, %s47
      %s64 = sphi 0, %s48
      %s74 = sphi 0, %s76
      %s77 = sphi 0, %s74
      %s78 = sphi 0, %s77
      %s94 = sphi 0, %s78
      %s104 = sphi 0, %s106
      %s107 = sphi 0, %s104
      %s108 = sphi 0, %s107
      %s124 = sphi 0, %s108
    $region4: #{spectrogram.1} parent=1 // loop_header_branch
      %14 = sbr.rel (%p12) target = $region8
    $region5: #{spectrogram.1} parent=1 // loop_body
      %s16 = ssub.s32 %s11, 1
      %s17 = ssub.s32 %s11, 2
      %s27 = sadd.s32 1, %s20
      %p28 = scmp.ge.s32.totalorder %s27, 1
      %s29 = scalar_select %p28, 0, %s27
      %s30 = sadd.s32 1, %s19
      %s31 = scalar_select %p28, %s30, %s19
      %p32 = scmp.ge.s32.totalorder %s31, 1
      %s33 = scalar_select %p32, 0, %s31
      %s34 = sadd.s32 1, %s18
      %s35 = scalar_select %p32, %s34, %s18
      %p36 = scmp.ge.s32.totalorder %s35, 2
      %s37 = scalar_select %p36, 0, %s35
      %s38 = ssub.s32 %s18, %s37
      %s39 = ssub.s32 %s19, %s33
      %s40 = sor.u32 %s38, %s39
      %s41 = ssub.s32 %s20, %s29
      %s42 = sor.u32 %s40, %s41
      %p43 = scmp.eq.s32.totalorder %s42, 0
      %s45 = sadd.s32 %s44, 1
      %s46 = scalar_select %p43, %s44, %s45
      %p49 = pneg %p43
      %p50 = scmp.eq.s32.totalorder %s11, 1
      %p51 = por %p49, %p50
      %p52 = scmp.ne.s32.totalorder %s44, %s47
      %p53 = scmp.eq.s32.totalorder %s11, 0
      %p54 = por %p52, %p53
      %p55 = scmp.ne.s32.totalorder %s44, %s47
      %p56 = scmp.eq.s32.totalorder %s16, 1
      %p57 = por %p55, %p56
      %p58 = scmp.ne.s32.totalorder %s47, %s48
      %p59 = scmp.eq.s32.totalorder %s16, 0
      %p60 = por %p58, %p59
      %p61 = scmp.ne.s32.totalorder %s47, %s48
      %p62 = scmp.eq.s32.totalorder %s17, 1
      %p63 = por %p61, %p62
      %p65 = scmp.ne.s32.totalorder %s48, %s64
      %p66 = scmp.eq.s32.totalorder %s17, 0
      %p67 = por %p65, %p66
      %s68 = ssub.s32 %s18, %s37
      %s69 = ssub.s32 %s19, %s33
      %s70 = sor.u32 %s68, %s69
      %s71 = ssub.s32 %s20, %s29
      %s72 = sor.u32 %s70, %s71
      %p73 = scmp.eq.s32.totalorder %s72, 0
      %s75 = sadd.s32 %s74, 1
      %s76 = scalar_select %p73, %s74, %s75
      %p79 = pneg %p73
      %p80 = scmp.eq.s32.totalorder %s11, 1
      %p81 = por %p79, %p80
      %p82 = scmp.ne.s32.totalorder %s74, %s77
      %p83 = scmp.eq.s32.totalorder %s11, 0
      %p84 = por %p82, %p83
      %p85 = scmp.ne.s32.totalorder %s74, %s77
      %p86 = scmp.eq.s32.totalorder %s16, 1
      %p87 = por %p85, %p86
      %p88 = scmp.ne.s32.totalorder %s77, %s78
      %p89 = scmp.eq.s32.totalorder %s16, 0
      %p90 = por %p88, %p89
      %p91 = scmp.ne.s32.totalorder %s77, %s78
      %p92 = scmp.eq.s32.totalorder %s17, 1
      %p93 = por %p91, %p92
      %p95 = scmp.ne.s32.totalorder %s78, %s94
      %p96 = scmp.eq.s32.totalorder %s17, 0
      %p97 = por %p95, %p96
      %s98 = ssub.s32 %s18, %s37
      %s99 = ssub.s32 %s19, %s33
      %s100 = sor.u32 %s98, %s99
      %s101 = ssub.s32 %s20, %s29
      %s102 = sor.u32 %s100, %s101
      %p103 = scmp.eq.s32.totalorder %s102, 0
      %s105 = sadd.s32 %s104, 1
      %s106 = scalar_select %p103, %s104, %s105
      %p109 = pneg %p103
      %p110 = scmp.eq.s32.totalorder %s11, 1
      %p111 = por %p109, %p110
      %p112 = scmp.ne.s32.totalorder %s104, %s107
      %p113 = scmp.eq.s32.totalorder %s11, 0
      %p114 = por %p112, %p113
      %p115 = scmp.ne.s32.totalorder %s104, %s107
      %p116 = scmp.eq.s32.totalorder %s16, 1
      %p117 = por %p115, %p116
      %p118 = scmp.ne.s32.totalorder %s107, %s108
      %p119 = scmp.eq.s32.totalorder %s16, 0
      %p120 = por %p118, %p119
      %p121 = scmp.ne.s32.totalorder %s107, %s108
      %p122 = scmp.eq.s32.totalorder %s17, 1
      %p123 = por %p121, %p122
      %p125 = scmp.ne.s32.totalorder %s108, %s124
      %p126 = scmp.eq.s32.totalorder %s17, 0
      %p127 = por %p125, %p126
      %p128 = scmp.le.s32.totalorder 1, %s11
      %p129 = scmp.lt.s32.totalorder %s11, 3
      %p130 = pnand %p128, %p129
      %p131 = pneg %p130
      // Predicated region
      $region9: #{spectrogram.1} parent=5 // pred_check
        _
      $region10: #{spectrogram.1} parent=5 // pred_check_branch
        %133 = sbr.rel (%p130) target = $region12
      $region11: #{spectrogram.1} parent=5 // pred_region
        %s134 = ssub.s32 %s11, 1
      $region12: #{spectrogram.1} parent=5 // pred_fallthru
        _
      %p135 = scmp.lt.s32.totalorder %s11, 2
      // Predicated region
      $region13: #{spectrogram.1} parent=5 // pred_check
        %p136 = pneg %p135
      $region14: #{spectrogram.1} parent=5 // pred_check_branch
        %138 = sbr.rel (%p136) target = $region16
      $region15: #{spectrogram.1} parent=5 // pred_region
        // Predicated region
        $region17: #{spectrogram.1} parent=15 // pred_check
          %p139 = pneg %p54
        $region18: #{spectrogram.1} parent=15 // pred_check_branch
          %141 = sbr.rel (%p139) target = $region20
        $region19: #{spectrogram.1} parent=15 // pred_region
          %s142 = smul.u32 2, %s19
          %p143 = scmp.lt.s32.totalorder %s18, 1
          %s144 = scalar_select %p143, %s18, 1
          %p145 = scmp.lt.s32.totalorder %s142, 1
          %s146 = scalar_select %p145, %s142, 1
          %p147 = scmp.lt.s32.totalorder %s20, 0
          %s148 = scalar_select %p147, %s20, 0
          %s149 = sadd.s32 %s148, %s146
          %s150 = smul.addr %s144, 8
          %s151 = sadd.s32 %s149, %s150
          %s152 = smul.addr %s151, 8
          %s153 = scalar_lea.vmem %s0, %s152
          %s154 = smul.u32 2, %s19
        $region20: #{spectrogram.1} parent=15 // pred_fallthru
          _
        // Predicated region
        $region21: #{spectrogram.1} parent=15 // pred_check
          %p155 = pneg %p84
        $region22: #{spectrogram.1} parent=15 // pred_check_branch
          %157 = sbr.rel (%p155) target = $region24
        $region23: #{spectrogram.1} parent=15 // pred_region
          %s158 = smul.u32 2, %s19
          %p159 = scmp.lt.s32.totalorder %s18, 1
          %s160 = scalar_select %p159, %s18, 1
          %p161 = scmp.lt.s32.totalorder %s158, 1
          %s162 = scalar_select %p161, %s158, 1
          %p163 = scmp.lt.s32.totalorder %s20, 0
          %s164 = scalar_select %p163, %s20, 0
          %s165 = sadd.s32 %s164, %s162
          %s166 = smul.addr %s160, 8
          %s167 = sadd.s32 %s165, %s166
          %s168 = smul.addr %s167, 8
          %s169 = scalar_lea.vmem %s1, %s168
          %s170 = smul.u32 2, %s19
        $region24: #{spectrogram.1} parent=15 // pred_fallthru
          _
      $region16: #{spectrogram.1} parent=5 // pred_fallthru
        _
      %p171 = scmp.le.s32.totalorder 1, %s11
      %p172 = scmp.lt.s32.totalorder %s11, 3
      %p173 = pnand %p171, %p172
      %p174 = pneg %p173
      // Predicated region
      $region25: #{spectrogram.1} parent=5 // pred_check
        _
      $region26: #{spectrogram.1} parent=5 // pred_check_branch
        %176 = sbr.rel (%p173) target = $region28
      $region27: #{spectrogram.1} parent=5 // pred_region
        %s177 = ssub.s32 %s11, 1
        %s178 = smul.u32 2, %s22
        %p179 = scmp.lt.s32.totalorder %s21, 1
        %s180 = scalar_select %p179, %s21, 1
        %p181 = scmp.lt.s32.totalorder %s178, 1
        %s182 = scalar_select %p181, %s178, 1
        %p183 = scmp.lt.s32.totalorder %s23, 0
        %s184 = scalar_select %p183, %s23, 0
        %s185 = sadd.s32 %s184, %s182
        %s186 = smul.addr %s180, 8
        %s187 = sadd.s32 %s185, %s186
        %s188 = smul.addr %s187, 8
        %s189 = scalar_lea.vmem %s0, %s188
        %p190 = pneg %p60
        %p191 = pneg %p57
        %s192 = smul.u32 2, %s22
        %p193 = scmp.lt.s32.totalorder %s21, 1
        %s194 = scalar_select %p193, %s21, 1
        %p195 = scmp.lt.s32.totalorder %s192, 1
        %s196 = scalar_select %p195, %s192, 1
        %p197 = scmp.lt.s32.totalorder %s23, 0
        %s198 = scalar_select %p197, %s23, 0
        %s199 = sadd.s32 %s198, %s196
        %s200 = smul.addr %s194, 8
        %s201 = sadd.s32 %s199, %s200
        %s202 = smul.addr %s201, 8
        %s203 = scalar_lea.vmem %s1, %s202
        %p204 = pneg %p90
        %p205 = pneg %p87
        %p206 = pneg %p120
        %p207 = pneg %p117
        %s208 = sand.u32 %s107, 1
        %s209 = scalar_lea.sflag [#allocation3], %s208
        %s210 = sand.u32 %s107, 1
        %s211 = smul.addr %s210, 16
        %s212 = scalar_lea.vmem [#allocation2], %s211
        %s213 = smul.u32 2, %s22
        %p214 = scmp.lt.s32.totalorder %s21, 1
        %s215 = scalar_select %p214, %s21, 1
        %p216 = scmp.lt.s32.totalorder %s213, 1
        %s217 = scalar_select %p216, %s213, 1
        %p218 = scmp.lt.s32.totalorder %s23, 0
        %s219 = scalar_select %p218, %s23, 0
        %s220 = sadd.s32 %s219, %s217
        %s221 = smul.addr %s215, 8
        %s222 = sadd.s32 %s220, %s221
        %s223 = smul.addr %s222, 8
        %s224 = scalar_lea.vmem %s0, %s223
        %s225 = smul.u32 2, %s22
        %s226 = smul.u32 2, %s22
        %p227 = scmp.lt.s32.totalorder %s21, 1
        %s228 = scalar_select %p227, %s21, 1
        %p229 = scmp.lt.s32.totalorder %s226, 1
        %s230 = scalar_select %p229, %s226, 1
        %p231 = scmp.lt.s32.totalorder %s23, 0
        %s232 = scalar_select %p231, %s23, 0
        %s233 = sadd.s32 %s232, %s230
        %s234 = smul.addr %s228, 8
        %s235 = sadd.s32 %s233, %s234
        %s236 = smul.addr %s235, 8
        %s237 = scalar_lea.vmem %s1, %s236
        %s238 = smul.u32 2, %s22
        %s239 = smul.u32 2, %s22
        %v240 = vld [vmem:[%s224] sm:$0xff]
        %v241 = vld [vmem:[%s224 + $0x8] sm:$0xff]
        %v242 = vld [vmem:[%s224 + $0x10] sm:$0xff]
        %v243 = vld [vmem:[%s224 + $0x18] sm:$0xff]
        %v244 = vld [vmem:[%s224 + $0x20] sm:$0xff]
        %v245 = vld [vmem:[%s224 + $0x28] sm:$0xff]
        %v246 = vld [vmem:[%s224 + $0x30] sm:$0xff]
        %v247 = vld [vmem:[%s224 + $0x38] sm:$0xff]
        %v248 = vld [vmem:[%s237] sm:$0xff]
        %v249 = vld [vmem:[%s237 + $0x8] sm:$0xff]
        %v250 = vld [vmem:[%s237 + $0x10] sm:$0xff]
        %v251 = vld [vmem:[%s237 + $0x18] sm:$0xff]
        %v252 = vld [vmem:[%s237 + $0x20] sm:$0xff]
        %v253 = vld [vmem:[%s237 + $0x28] sm:$0xff]
        %v254 = vld [vmem:[%s237 + $0x30] sm:$0xff]
        %v255 = vld [vmem:[%s237 + $0x38] sm:$0xff]
        %v256 = vmul.f32 %v240, %v240
        %v257 = vmul.f32 %v241, %v241
        %v258 = vmul.f32 %v242, %v242
        %v259 = vmul.f32 %v243, %v243
        %v260 = vmul.f32 %v244, %v244
        %v261 = vmul.f32 %v245, %v245
        %v262 = vmul.f32 %v246, %v246
        %v263 = vmul.f32 %v247, %v247
        %v264 = vmul.f32 %v248, %v248
        %v265 = vmul.f32 %v249, %v249
        %v266 = vmul.f32 %v250, %v250
        %v267 = vmul.f32 %v251, %v251
        %v268 = vmul.f32 %v252, %v252
        %v269 = vmul.f32 %v253, %v253
        %v270 = vmul.f32 %v254, %v254
        %v271 = vmul.f32 %v255, %v255
        %v272 = vadd.f32 %v256, %v264
        %v273 = vadd.f32 %v257, %v265
        %v274 = vadd.f32 %v258, %v266
        %v275 = vadd.f32 %v259, %v267
        %v276 = vadd.f32 %v260, %v268
        %v277 = vadd.f32 %v261, %v269
        %v278 = vadd.f32 %v262, %v270
        %v279 = vadd.f32 %v263, %v271
        %v280 = vrsqrt.pop %v272
        %v281 = vmul.f32 %v272, %v280
        %vm282 = vcmp.eq.f32.partialorder %v272, inf
        %v283 = vsel %vm282, %v272, %v281
        %vm284 = vcmp.eq.f32.partialorder %v272, 0.0
        %v285 = vand.u32 %v272, 2147483648
        %v286 = vsel %vm284, %v285, %v283
        %v287 = vrsqrt.pop %v273
        %v288 = vmul.f32 %v273, %v287
        %vm289 = vcmp.eq.f32.partialorder %v273, inf
        %v290 = vsel %vm289, %v273, %v288
        %vm291 = vcmp.eq.f32.partialorder %v273, 0.0
        %v292 = vand.u32 %v273, 2147483648
        %v293 = vsel %vm291, %v292, %v290
        %v294 = vrsqrt.pop %v274
        %v295 = vmul.f32 %v274, %v294
        %vm296 = vcmp.eq.f32.partialorder %v274, inf
        %v297 = vsel %vm296, %v274, %v295
        %vm298 = vcmp.eq.f32.partialorder %v274, 0.0
        %v299 = vand.u32 %v274, 2147483648
        %v300 = vsel %vm298, %v299, %v297
        %v301 = vrsqrt.pop %v275
        %v302 = vmul.f32 %v275, %v301
        %vm303 = vcmp.eq.f32.partialorder %v275, inf
        %v304 = vsel %vm303, %v275, %v302
        %vm305 = vcmp.eq.f32.partialorder %v275, 0.0
        %v306 = vand.u32 %v275, 2147483648
        %v307 = vsel %vm305, %v306, %v304
        %v308 = vrsqrt.pop %v276
        %v309 = vmul.f32 %v276, %v308
        %vm310 = vcmp.eq.f32.partialorder %v276, inf
        %v311 = vsel %vm310, %v276, %v309
        %vm312 = vcmp.eq.f32.partialorder %v276, 0.0
        %v313 = vand.u32 %v276, 2147483648
        %v314 = vsel %vm312, %v313, %v311
        %v315 = vrsqrt.pop %v277
        %v316 = vmul.f32 %v277, %v315
        %vm317 = vcmp.eq.f32.partialorder %v277, inf
        %v318 = vsel %vm317, %v277, %v316
        %vm319 = vcmp.eq.f32.partialorder %v277, 0.0
        %v320 = vand.u32 %v277, 2147483648
        %v321 = vsel %vm319, %v320, %v318
        %v322 = vrsqrt.pop %v278
        %v323 = vmul.f32 %v278, %v322
        %vm324 = vcmp.eq.f32.partialorder %v278, inf
        %v325 = vsel %vm324, %v278, %v323
        %vm326 = vcmp.eq.f32.partialorder %v278, 0.0
        %v327 = vand.u32 %v278, 2147483648
        %v328 = vsel %vm326, %v327, %v325
        %v329 = vrsqrt.pop %v279
        %v330 = vmul.f32 %v279, %v329
        %vm331 = vcmp.eq.f32.partialorder %v279, inf
        %v332 = vsel %vm331, %v279, %v330
        %vm333 = vcmp.eq.f32.partialorder %v279, 0.0
        %v334 = vand.u32 %v279, 2147483648
        %v335 = vsel %vm333, %v334, %v332
        %vm336 = vcmask 130048
        %v337 = vsel %vm336, %v286, 0.0
        %v338 = vsel %vm336, %v300, 0.0
        %v339 = vadd.f32 %v337, %v338
        %v340 = vsel %vm336, %v314, 0.0
        %v341 = vadd.f32 %v339, %v340
        %v342 = vsel %vm336, %v328, 0.0
        %v343 = vadd.f32 %v341, %v342
        %v344 = vsel %vm336, %v293, 0.0
        %v345 = vsel %vm336, %v307, 0.0
        %v346 = vadd.f32 %v344, %v345
        %v347 = vsel %vm336, %v321, 0.0
        %v348 = vadd.f32 %v346, %v347
        %v349 = vsel %vm336, %v335, 0.0
        %v350 = vadd.f32 %v348, %v349
        %v351 = vrcp.pop 4.0
        %v352 = vmul.f32 %v343, %v351
        %v353 = vmul.f32 %v350, %v351
        %354 = vst.msk [vmem:[%s212] sm:$0xff] %vm336, %v352
        %355 = vst.msk [vmem:[%s212 + $0x8] sm:$0xff] %vm336, %v353
        %s356 = sand.u32 %s107, 1
        %s357 = scalar_lea.sflag [#allocation3], %s356
        %s358 = sand.u32 %s107, 1
        %s359 = smul.addr %s358, 16
        %s360 = scalar_lea.vmem [#allocation2], %s359
        // Predicated region
        $region29: #{spectrogram.1} parent=27 // pred_check
          %p361 = pneg %p117
        $region30: #{spectrogram.1} parent=27 // pred_check_branch
          %363 = sbr.rel (%p361) target = $region32
        $region31: #{spectrogram.1} parent=27 // pred_region
          %s364 = smul.u32 2, %s22
          %s366 = ssub.s32 256, 256
          %367 = vsyncadd %s357, %s366
          %s368 = sadd.s32 %s23, %s364
          %s369 = smul.addr %s21, 2
          %s370 = sadd.s32 %s368, %s369
          %s371 = smul.addr %s370, 128
          %s372 = scalar_lea.hbm %s2, %s371
          %s373 = sshll.u32 %s360, 4
          %s374 = int_to_ptr.vmem [resolvable:$true] %s373
          %379 = dma.vmem_to_hbm [thread:$0]  %s374, 256, %s372, %s357, 128, 128, 8
        $region32: #{spectrogram.1} parent=27 // pred_fallthru
          _
      $region28: #{spectrogram.1} parent=5 // pred_fallthru
        _
      %p380 = scmp.le.s32.totalorder 2, %s11
      // Predicated region
      $region33: #{spectrogram.1} parent=5 // pred_check
        %p381 = pneg %p380
      $region34: #{spectrogram.1} parent=5 // pred_check_branch
        %383 = sbr.rel (%p381) target = $region36
      $region35: #{spectrogram.1} parent=5 // pred_region
        %s384 = ssub.s32 %s11, 2
        // Predicated region
        $region37: #{spectrogram.1} parent=35 // pred_check
          %p385 = pneg %p123
        $region38: #{spectrogram.1} parent=35 // pred_check_branch
          %387 = sbr.rel (%p385) target = $region40
        $region39: #{spectrogram.1} parent=35 // pred_region
          %s388 = sand.u32 %s108, 1
          %s389 = scalar_lea.sflag [#allocation3], %s388
          %s390 = sand.u32 %s108, 1
          %s391 = smul.addr %s390, 16
          %s392 = scalar_lea.vmem [#allocation2], %s391
          %393 = dma.done %s389, 256
        $region40: #{spectrogram.1} parent=35 // pred_fallthru
          _
      $region36: #{spectrogram.1} parent=5 // pred_fallthru
        _
    $region6: #{spectrogram.1} parent=1 // loop_footer
      %s15 = sadd.s32 1, %s11
    $region7: #{spectrogram.1} parent=1 // loop_footer_branch
      %10 = sbr.rel target = $region3
    $region8: #{spectrogram.1} parent=1 // loop_exit
      _
    %394 = vsyncpa [#allocation3], 1
    %s395 = scalar_lea.sflag [#allocation3], 1
    %396 = vsyncpa %s395, 1

</llo_original>
